<compile_context>
chip_gen: v5e
topology: v5e:2x2
jax: 0.10.0
libtpu: 0.0.40
codegen_flags: <defaults>
</compile_context>

<pallas_src>
import functools
import math

import jax
import jax.numpy as jnp
from jax.experimental import pallas as pl
from jax.experimental.pallas import tpu as pltpu


def _round_up(x, m):
    return ((x + m - 1) // m) * m


# ----------------------------------------------------------------------------
# Packed weight-slab layout (all sections sublane-aligned, 128-lane wide).
# ----------------------------------------------------------------------------
def _slab_layout(F, L, H, O):
    LH = L * H
    O_pad = _round_up(O, 128)
    width = max(_round_up(LH, 128), O_pad)
    FA = _round_up(F, 8)
    LHr = _round_up(LH, 8)
    off_wih0 = 0                  # (F, LH)   layer-0 input projection (lanes [0,H))
    off_wblk = FA                 # (LH, LH)  block-structured recurrent weight
    off_bpk = FA + LHr            # (1, LH)   packed biases [b0 | b1 | ...]
    off_wfc = off_bpk + 8         # (LH, O_pad) FC weight (top-layer lane rows only)
    off_bfc = off_wfc + LHr       # (1, O_pad)  FC bias
    rows = off_bfc + 8
    return dict(LH=LH, O_pad=O_pad, width=width, rows=rows,
                off_wih0=off_wih0, off_wblk=off_wblk, off_bpk=off_bpk,
                off_wfc=off_wfc, off_bfc=off_bfc)


def prepare_params(params, *, input_size, hidden_size, num_layers, num_outputs):
    """One-time weight packing (outside the jitted forward)."""
    F, H, L, O = input_size, hidden_size, num_layers, num_outputs
    lay = _slab_layout(F, L, H, O)
    slab = jnp.zeros((lay["rows"], lay["width"]), jnp.float32)

    # layer-0 input projection, packed into lanes [0, H)
    w_ih0 = params["rnn"][0][0]
    slab = slab.at[lay["off_wih0"]:lay["off_wih0"] + F, 0:H].set(w_ih0.T)

    # block-structured recurrent weight:
    #   block (l, l)     = w_hh_l^T
    #   block (l-1, l)   = w_ih_l^T   (l >= 1)
    # and packed per-layer bias row.
    r0 = lay["off_wblk"]
    for l, (w_ih, w_hh, b) in enumerate(params["rnn"]):
        slab = slab.at[r0 + l * H:r0 + (l + 1) * H, l * H:(l + 1) * H].set(w_hh.T)
        if l >= 1:
            slab = slab.at[r0 + (l - 1) * H:r0 + l * H, l * H:(l + 1) * H].set(w_ih.T)
        slab = slab.at[lay["off_bpk"], l * H:(l + 1) * H].set(b.reshape(-1))

    # FC head: only the top layer's lane rows carry weight, rest zero.
    rf = lay["off_wfc"]
    slab = slab.at[rf + (num_layers - 1) * H:rf + num_layers * H, 0:O].set(
        params["fc_w"].T)
    slab = slab.at[lay["off_bfc"], 0:O].set(params["fc_b"].reshape(-1))
    return slab


# ----------------------------------------------------------------------------
# Fused kernel: hoisted projection + wavefronted recurrence + FC head.
# ----------------------------------------------------------------------------
def _make_kernel(T, Bp, L, H, F, lay):
    LH, O_pad = lay["LH"], lay["O_pad"]
    o_wih0, o_wblk = lay["off_wih0"], lay["off_wblk"]
    o_bpk, o_wfc, o_bfc = lay["off_bpk"], lay["off_wfc"], lay["off_bfc"]

    def kernel(x_ref, h0_ref, w_ref, out_ref, hn_ref, y_ref):
        # ---- one-time weight loads (static, sublane-aligned slices) --------
        wih0p = w_ref[o_wih0:o_wih0 + F, 0:LH]      # (F, LH); lanes [H:) are zero
        wblk = w_ref[o_wblk:o_wblk + LH, 0:LH]      # (LH, LH) block recurrent weight
        bpk = w_ref[o_bpk:o_bpk + 1, 0:LH]          # (1, LH)  [b0 | b1 | ...]
        wfcp = w_ref[o_wfc:o_wfc + LH, 0:O_pad]     # (LH, O_pad) top-layer rows only
        bfcp = w_ref[o_bfc:o_bfc + 1, 0:O_pad]      # (1, O_pad)

        # ---- hoisted layer-0 projection for all timesteps (one MXU matmul).
        # Row block t of `xp` is exactly the per-step packed addend:
        #   lanes [0:H)        -> x_t @ W_ih0^T + b0
        #   lanes [l*H:(l+1)H) -> b_l              (l >= 1)
        xp = jnp.dot(x_ref[...], wih0p, preferred_element_type=jnp.float32) + bpk

        hinit = h0_ref[...]                          # (Bp, LH) packed initial hidden
        lane = jax.lax.broadcasted_iota(jnp.int32, (Bp, LH), 1)

        # ---- software wavefront over the layer stack: one matmul + one tanh
        # per diagonal step; T + L - 1 serial steps instead of T * L. ---------
        hp = hinit
        for d in range(T + L - 1):
            a = min(d, T - 1) * Bp                   # drain steps reuse last addend
            hp_new = jnp.tanh(
                xp[a:a + Bp, :]
                + jnp.dot(hp, wblk, preferred_element_type=jnp.float32))
            if d < L - 1:
                # wavefront fill: layers above the diagonal keep their initial state
                hp = jnp.where(lane < (d + 1) * H, hp_new, hinit)
            else:
                hp = hp_new
            t = d - (L - 1)
            if t >= 0:
                # sublane-aligned scratch write of the packed state; only the
                # top layer's lanes are consumed by the FC weight below.
                y_ref[t * Bp:(t + 1) * Bp, :] = hp
            l = d - (T - 1)
            if 0 <= l < L:
                hn_ref[l] = hp[:, l * H:(l + 1) * H]  # final hidden, written once

        # ---- batched FC head over all T*Bp rows; single lane-dense store. ---
        out_ref[...] = (jnp.dot(y_ref[...], wfcp, preferred_element_type=jnp.float32)
                        + bfcp)

    return kernel


# ----------------------------------------------------------------------------
# Forward pass matching rnn_net.forward(x, hidden) -> (fc_out, h_n)
# ----------------------------------------------------------------------------
def rnn_net_forward(wslab, x, hidden, *, sequence_length, input_size,
                    hidden_size, num_layers, num_outputs):
    T, F, H, L, O = sequence_length, input_size, hidden_size, num_layers, num_outputs
    lay = _slab_layout(F, L, H, O)
    LH, O_pad = lay["LH"], lay["O_pad"]
    B = x.shape[0]
    Bp = _round_up(max(B, 1), 8)                    # pad batch to 8 sublanes

    # x.view(B, T, F) -> time-major, batch-padded 2-D slab (T*Bp, F).
    x_t = jnp.transpose(x.reshape(B, T, F).astype(jnp.float32), (1, 0, 2))
    x_slab = jnp.zeros((T, Bp, F), jnp.float32).at[:, :B, :].set(x_t)
    x_slab = x_slab.reshape(T * Bp, F)

    # hidden (L, B, H) -> lane-packed (Bp, L*H), padded rows zero.
    h_pack = jnp.zeros((Bp, LH), jnp.float32).at[:B, :].set(
        jnp.transpose(hidden.astype(jnp.float32), (1, 0, 2)).reshape(B, LH))

    vmem = pl.BlockSpec(memory_space=pltpu.MemorySpace.VMEM)
    out2d, hn = pl.pallas_call(
        _make_kernel(T, Bp, L, H, F, lay),
        out_shape=(jax.ShapeDtypeStruct((T * Bp, O_pad), jnp.float32),
                   jax.ShapeDtypeStruct((L, Bp, H), jnp.float32)),
        in_specs=[vmem, vmem, vmem],
        out_specs=(vmem, vmem),
        scratch_shapes=[pltpu.VMEM((T * Bp, LH), jnp.float32)],
    )(x_slab, h_pack, wslab)

    # back to batch_first (B, T, num_outputs); drop batch/lane padding.
    fc_out = out2d.reshape(T, Bp, O_pad)[:, :B, :O].transpose(1, 0, 2)
    h_n = hn[:, :B, :]
    return fc_out, h_n


# ----------------------------------------------------------------------------
# Pure-JAX reference (lax.scan) for a correctness sanity check.
# ----------------------------------------------------------------------------
def rnn_net_reference(params, x, hidden, *, sequence_length, input_size):
    B = x.shape[0]
    x = x.reshape(B, sequence_length, input_size).transpose(1, 0, 2)
    h_finals = []
    layer_in = x
    for l, (w_ih, w_hh, b) in enumerate(params["rnn"]):
        def step(h, x_t, w_ih=w_ih, w_hh=w_hh, b=b):
            h_new = jnp.tanh(x_t @ w_ih.T + h @ w_hh.T + b[0])
            return h_new, h_new
        h_t, outs = jax.lax.scan(step, hidden[l], layer_in)
        h_finals.append(h_t)
        layer_in = outs
    fc_out = layer_in @ params["fc_w"].T + params["fc_b"][0]
    return fc_out.transpose(1, 0, 2), jnp.stack(h_finals, axis=0)


def init_params(key, num_outputs, input_size, hidden_size, num_layers):
    """Deterministic synthetic init matching PyTorch RNN/Linear shapes."""
    k = 1.0 / math.sqrt(hidden_size)
    params = {"rnn": []}
    for l in range(num_layers):
        f_in = input_size if l == 0 else hidden_size
        key, k1, k2, k3, k4 = jax.random.split(key, 5)
        w_ih = jax.random.uniform(k1, (hidden_size, f_in), jnp.float32, -k, k)
        w_hh = jax.random.uniform(k2, (hidden_size, hidden_size), jnp.float32, -k, k)
        b_ih = jax.random.uniform(k3, (hidden_size,), jnp.float32, -k, k)
        b_hh = jax.random.uniform(k4, (hidden_size,), jnp.float32, -k, k)
        params["rnn"].append((w_ih, w_hh, (b_ih + b_hh).reshape(1, hidden_size)))
    key, k1, k2 = jax.random.split(key, 3)
    params["fc_w"] = jax.random.uniform(k1, (num_outputs, hidden_size), jnp.float32, -k, k)
    params["fc_b"] = jax.random.uniform(k2, (num_outputs,), jnp.float32, -k, k).reshape(1, num_outputs)
    return params


if __name__ == "__main__":
    num_outputs = 4
    input_size = 16
    sequence_length = 8
    hidden_size = 32
    num_layers = 2
    batch = 2

    key = jax.random.PRNGKey(0)
    key, kp, kx = jax.random.split(key, 3)
    params = init_params(kp, num_outputs, input_size, hidden_size, num_layers)

    # One-time weight packing, hoisted out of the jitted forward.
    wslab = jax.device_put(prepare_params(
        params, input_size=input_size, hidden_size=hidden_size,
        num_layers=num_layers, num_outputs=num_outputs))

    # x as it arrives before .view(): (B, seq * input_size)
    x = jax.random.normal(kx, (batch, sequence_length * input_size), jnp.float32)
    # init_hidden: zeros (num_layers, B, hidden)
    hidden = jnp.zeros((num_layers, batch, hidden_size), jnp.float32)

    forward = jax.jit(functools.partial(rnn_net_forward,
                                        sequence_length=sequence_length,
                                        input_size=input_size,
                                        hidden_size=hidden_size,
                                        num_layers=num_layers,
                                        num_outputs=num_outputs))
    fc_out, h_n = forward(wslab, x, hidden)
    fc_out = jax.block_until_ready(fc_out)
    h_n = jax.block_until_ready(h_n)

    assert fc_out.shape == (batch, sequence_length, num_outputs)
    assert h_n.shape == (num_layers, batch, hidden_size)

    ref_out, ref_h = rnn_net_reference(params, x, hidden,
                                       sequence_length=sequence_length,
                                       input_size=input_size)
    assert jnp.allclose(fc_out, ref_out, atol=1e-4, rtol=1e-4)
    assert jnp.allclose(h_n, ref_h, atol=1e-4, rtol=1e-4)

    print("KERNEL_OK")
</pallas_src>

<mosaic_0001>
module attributes {stable_mosaic.version = 11 : i64} {
  func.func @kernel(%arg0: memref<64x16xf32, #tpu.memory_space<vmem>>, %arg1: memref<8x64xf32, #tpu.memory_space<vmem>>, %arg2: memref<160x128xf32, #tpu.memory_space<vmem>>, %arg3: memref<64x128xf32, #tpu.memory_space<vmem>>, %arg4: memref<2x8x32xf32, #tpu.memory_space<vmem>>, %arg5: memref<64x64xf32, #tpu.memory_space<vmem>>) attributes {dimension_semantics = [], scalar_prefetch = 0 : i64, scratch_operands = 1 : i64, tpu.core_type = #tpu.core_type<tc>} {
    %c0 = arith.constant 0 : index
    %c0_0 = arith.constant 0 : index
    %0 = vector.load %arg2[%c0, %c0_0] : memref<160x128xf32, #tpu.memory_space<vmem>>, vector<16x64xf32>
    %c16 = arith.constant 16 : index
    %c0_1 = arith.constant 0 : index
    %1 = vector.load %arg2[%c16, %c0_1] : memref<160x128xf32, #tpu.memory_space<vmem>>, vector<64x64xf32>
    %c80 = arith.constant 80 : index
    %c0_2 = arith.constant 0 : index
    %2 = vector.load %arg2[%c80, %c0_2] : memref<160x128xf32, #tpu.memory_space<vmem>>, vector<1x64xf32>
    %c88 = arith.constant 88 : index
    %c0_3 = arith.constant 0 : index
    %3 = vector.load %arg2[%c88, %c0_3] : memref<160x128xf32, #tpu.memory_space<vmem>>, vector<64x128xf32>
    %c152 = arith.constant 152 : index
    %c0_4 = arith.constant 0 : index
    %4 = vector.load %arg2[%c152, %c0_4] : memref<160x128xf32, #tpu.memory_space<vmem>>, vector<1x128xf32>
    %c0_5 = arith.constant 0 : index
    %c0_6 = arith.constant 0 : index
    %5 = vector.load %arg0[%c0_5, %c0_6] : memref<64x16xf32, #tpu.memory_space<vmem>>, vector<64x16xf32>
    %cst = arith.constant dense<0.000000e+00> : vector<64x64xf32>
    %6 = tpu.matmul %5, %0, %cst {dimension_numbers = #tpu.dot_dimension_numbers<[1], [0], [0], [1], [0, 0, 1, 1], [], []>} : vector<64x16xf32>, vector<16x64xf32>, vector<64x64xf32> -> vector<64x64xf32>
    %7 = vector.broadcast %2 : vector<1x64xf32> to vector<64x64xf32>
    %8 = arith.addf %6, %7 : vector<64x64xf32>
    %c0_7 = arith.constant 0 : index
    %c0_8 = arith.constant 0 : index
    %9 = vector.load %arg1[%c0_7, %c0_8] : memref<8x64xf32, #tpu.memory_space<vmem>>, vector<8x64xf32>
    %10 = tpu.iota {dimensions = array<i32: 1>} : vector<8x64xi32>
    %11 = vector.extract_strided_slice %8 {offsets = [0, 0], sizes = [8, 64], strides = [1, 1]} : vector<64x64xf32> to vector<8x64xf32>
    %cst_9 = arith.constant dense<0.000000e+00> : vector<8x64xf32>
    %12 = tpu.matmul %9, %1, %cst_9 {dimension_numbers = #tpu.dot_dimension_numbers<[1], [0], [0], [1], [0, 0, 1, 1], [], []>} : vector<8x64xf32>, vector<64x64xf32>, vector<8x64xf32> -> vector<8x64xf32>
    %13 = arith.addf %11, %12 : vector<8x64xf32>
    %14 = math.tanh %13 : vector<8x64xf32>
    %c32_i32 = arith.constant 32 : i32
    %15 = vector.broadcast %c32_i32 : i32 to vector<8x64xi32>
    %16 = arith.cmpi slt, %10, %15 : vector<8x64xi32>
    %17 = arith.select %16, %14, %9 : vector<8x64xi1>, vector<8x64xf32>
    %18 = vector.extract_strided_slice %8 {offsets = [8, 0], sizes = [8, 64], strides = [1, 1]} : vector<64x64xf32> to vector<8x64xf32>
    %cst_10 = arith.constant dense<0.000000e+00> : vector<8x64xf32>
    %19 = tpu.matmul %17, %1, %cst_10 {dimension_numbers = #tpu.dot_dimension_numbers<[1], [0], [0], [1], [0, 0, 1, 1], [], []>} : vector<8x64xf32>, vector<64x64xf32>, vector<8x64xf32> -> vector<8x64xf32>
    %20 = arith.addf %18, %19 : vector<8x64xf32>
    %21 = math.tanh %20 : vector<8x64xf32>
    %c0_11 = arith.constant 0 : index
    %c0_12 = arith.constant 0 : index
    %22 = vector.load %arg5[%c0_11, %c0_12] : memref<64x64xf32, #tpu.memory_space<vmem>>, vector<8x64xf32>
    tpu.vector_store %arg5[%c0_11, %c0_12], %21 {strides = array<i32>} : memref<64x64xf32, #tpu.memory_space<vmem>>, vector<8x64xf32>,
    %23 = vector.extract_strided_slice %8 {offsets = [16, 0], sizes = [8, 64], strides = [1, 1]} : vector<64x64xf32> to vector<8x64xf32>
    %cst_13 = arith.constant dense<0.000000e+00> : vector<8x64xf32>
    %24 = tpu.matmul %21, %1, %cst_13 {dimension_numbers = #tpu.dot_dimension_numbers<[1], [0], [0], [1], [0, 0, 1, 1], [], []>} : vector<8x64xf32>, vector<64x64xf32>, vector<8x64xf32> -> vector<8x64xf32>
    %25 = arith.addf %23, %24 : vector<8x64xf32>
    %26 = math.tanh %25 : vector<8x64xf32>
    %c8 = arith.constant 8 : index
    %c0_14 = arith.constant 0 : index
    %27 = vector.load %arg5[%c8, %c0_14] : memref<64x64xf32, #tpu.memory_space<vmem>>, vector<8x64xf32>
    tpu.vector_store %arg5[%c8, %c0_14], %26 {strides = array<i32>} : memref<64x64xf32, #tpu.memory_space<vmem>>, vector<8x64xf32>,
    %28 = vector.extract_strided_slice %8 {offsets = [24, 0], sizes = [8, 64], strides = [1, 1]} : vector<64x64xf32> to vector<8x64xf32>
    %cst_15 = arith.constant dense<0.000000e+00> : vector<8x64xf32>
    %29 = tpu.matmul %26, %1, %cst_15 {dimension_numbers = #tpu.dot_dimension_numbers<[1], [0], [0], [1], [0, 0, 1, 1], [], []>} : vector<8x64xf32>, vector<64x64xf32>, vector<8x64xf32> -> vector<8x64xf32>
    %30 = arith.addf %28, %29 : vector<8x64xf32>
    %31 = math.tanh %30 : vector<8x64xf32>
    %c16_16 = arith.constant 16 : index
    %c0_17 = arith.constant 0 : index
    %32 = vector.load %arg5[%c16_16, %c0_17] : memref<64x64xf32, #tpu.memory_space<vmem>>, vector<8x64xf32>
    tpu.vector_store %arg5[%c16_16, %c0_17], %31 {strides = array<i32>} : memref<64x64xf32, #tpu.memory_space<vmem>>, vector<8x64xf32>,
    %33 = vector.extract_strided_slice %8 {offsets = [32, 0], sizes = [8, 64], strides = [1, 1]} : vector<64x64xf32> to vector<8x64xf32>
    %cst_18 = arith.constant dense<0.000000e+00> : vector<8x64xf32>
    %34 = tpu.matmul %31, %1, %cst_18 {dimension_numbers = #tpu.dot_dimension_numbers<[1], [0], [0], [1], [0, 0, 1, 1], [], []>} : vector<8x64xf32>, vector<64x64xf32>, vector<8x64xf32> -> vector<8x64xf32>
    %35 = arith.addf %33, %34 : vector<8x64xf32>
    %36 = math.tanh %35 : vector<8x64xf32>
    %c24 = arith.constant 24 : index
    %c0_19 = arith.constant 0 : index
    %37 = vector.load %arg5[%c24, %c0_19] : memref<64x64xf32, #tpu.memory_space<vmem>>, vector<8x64xf32>
    tpu.vector_store %arg5[%c24, %c0_19], %36 {strides = array<i32>} : memref<64x64xf32, #tpu.memory_space<vmem>>, vector<8x64xf32>,
    %38 = vector.extract_strided_slice %8 {offsets = [40, 0], sizes = [8, 64], strides = [1, 1]} : vector<64x64xf32> to vector<8x64xf32>
    %cst_20 = arith.constant dense<0.000000e+00> : vector<8x64xf32>
    %39 = tpu.matmul %36, %1, %cst_20 {dimension_numbers = #tpu.dot_dimension_numbers<[1], [0], [0], [1], [0, 0, 1, 1], [], []>} : vector<8x64xf32>, vector<64x64xf32>, vector<8x64xf32> -> vector<8x64xf32>
    %40 = arith.addf %38, %39 : vector<8x64xf32>
    %41 = math.tanh %40 : vector<8x64xf32>
    %c32 = arith.constant 32 : index
    %c0_21 = arith.constant 0 : index
    %42 = vector.load %arg5[%c32, %c0_21] : memref<64x64xf32, #tpu.memory_space<vmem>>, vector<8x64xf32>
    tpu.vector_store %arg5[%c32, %c0_21], %41 {strides = array<i32>} : memref<64x64xf32, #tpu.memory_space<vmem>>, vector<8x64xf32>,
    %43 = vector.extract_strided_slice %8 {offsets = [48, 0], sizes = [8, 64], strides = [1, 1]} : vector<64x64xf32> to vector<8x64xf32>
    %cst_22 = arith.constant dense<0.000000e+00> : vector<8x64xf32>
    %44 = tpu.matmul %41, %1, %cst_22 {dimension_numbers = #tpu.dot_dimension_numbers<[1], [0], [0], [1], [0, 0, 1, 1], [], []>} : vector<8x64xf32>, vector<64x64xf32>, vector<8x64xf32> -> vector<8x64xf32>
    %45 = arith.addf %43, %44 : vector<8x64xf32>
    %46 = math.tanh %45 : vector<8x64xf32>
    %c40 = arith.constant 40 : index
    %c0_23 = arith.constant 0 : index
    %47 = vector.load %arg5[%c40, %c0_23] : memref<64x64xf32, #tpu.memory_space<vmem>>, vector<8x64xf32>
    tpu.vector_store %arg5[%c40, %c0_23], %46 {strides = array<i32>} : memref<64x64xf32, #tpu.memory_space<vmem>>, vector<8x64xf32>,
    %48 = vector.extract_strided_slice %8 {offsets = [56, 0], sizes = [8, 64], strides = [1, 1]} : vector<64x64xf32> to vector<8x64xf32>
    %cst_24 = arith.constant dense<0.000000e+00> : vector<8x64xf32>
    %49 = tpu.matmul %46, %1, %cst_24 {dimension_numbers = #tpu.dot_dimension_numbers<[1], [0], [0], [1], [0, 0, 1, 1], [], []>} : vector<8x64xf32>, vector<64x64xf32>, vector<8x64xf32> -> vector<8x64xf32>
    %50 = arith.addf %48, %49 : vector<8x64xf32>
    %51 = math.tanh %50 : vector<8x64xf32>
    %c48 = arith.constant 48 : index
    %c0_25 = arith.constant 0 : index
    %52 = vector.load %arg5[%c48, %c0_25] : memref<64x64xf32, #tpu.memory_space<vmem>>, vector<8x64xf32>
    tpu.vector_store %arg5[%c48, %c0_25], %51 {strides = array<i32>} : memref<64x64xf32, #tpu.memory_space<vmem>>, vector<8x64xf32>,
    %53 = vector.extract_strided_slice %51 {offsets = [0, 0], sizes = [8, 32], strides = [1, 1]} : vector<8x64xf32> to vector<8x32xf32>
    %c0_26 = arith.constant 0 : index
    %c0_27 = arith.constant 0 : index
    %c0_28 = arith.constant 0 : index
    %54 = vector.load %arg4[%c0_26, %c0_27, %c0_28] : memref<2x8x32xf32, #tpu.memory_space<vmem>>, vector<1x8x32xf32>
    %55 = vector.shape_cast %54 : vector<1x8x32xf32> to vector<8x32xf32>
    %56 = vector.shape_cast %53 : vector<8x32xf32> to vector<1x8x32xf32>
    tpu.vector_store %arg4[%c0_26, %c0_27, %c0_28], %56 {strides = array<i32>} : memref<2x8x32xf32, #tpu.memory_space<vmem>>, vector<1x8x32xf32>,
    %57 = vector.extract_strided_slice %8 {offsets = [56, 0], sizes = [8, 64], strides = [1, 1]} : vector<64x64xf32> to vector<8x64xf32>
    %cst_29 = arith.constant dense<0.000000e+00> : vector<8x64xf32>
    %58 = tpu.matmul %51, %1, %cst_29 {dimension_numbers = #tpu.dot_dimension_numbers<[1], [0], [0], [1], [0, 0, 1, 1], [], []>} : vector<8x64xf32>, vector<64x64xf32>, vector<8x64xf32> -> vector<8x64xf32>
    %59 = arith.addf %57, %58 : vector<8x64xf32>
    %60 = math.tanh %59 : vector<8x64xf32>
    %c56 = arith.constant 56 : index
    %c0_30 = arith.constant 0 : index
    %61 = vector.load %arg5[%c56, %c0_30] : memref<64x64xf32, #tpu.memory_space<vmem>>, vector<8x64xf32>
    tpu.vector_store %arg5[%c56, %c0_30], %60 {strides = array<i32>} : memref<64x64xf32, #tpu.memory_space<vmem>>, vector<8x64xf32>,
    %62 = vector.extract_strided_slice %60 {offsets = [0, 32], sizes = [8, 32], strides = [1, 1]} : vector<8x64xf32> to vector<8x32xf32>
    %c1 = arith.constant 1 : index
    %c0_31 = arith.constant 0 : index
    %c0_32 = arith.constant 0 : index
    %63 = vector.load %arg4[%c1, %c0_31, %c0_32] : memref<2x8x32xf32, #tpu.memory_space<vmem>>, vector<1x8x32xf32>
    %64 = vector.shape_cast %63 : vector<1x8x32xf32> to vector<8x32xf32>
    %65 = vector.shape_cast %62 : vector<8x32xf32> to vector<1x8x32xf32>
    tpu.vector_store %arg4[%c1, %c0_31, %c0_32], %65 {strides = array<i32>} : memref<2x8x32xf32, #tpu.memory_space<vmem>>, vector<1x8x32xf32>,
    %c0_33 = arith.constant 0 : index
    %c0_34 = arith.constant 0 : index
    %66 = vector.load %arg5[%c0_33, %c0_34] : memref<64x64xf32, #tpu.memory_space<vmem>>, vector<64x64xf32>
    %cst_35 = arith.constant dense<0.000000e+00> : vector<64x128xf32>
    %67 = tpu.matmul %66, %3, %cst_35 {dimension_numbers = #tpu.dot_dimension_numbers<[1], [0], [0], [1], [0, 0, 1, 1], [], []>} : vector<64x64xf32>, vector<64x128xf32>, vector<64x128xf32> -> vector<64x128xf32>
    %68 = vector.broadcast %4 : vector<1x128xf32> to vector<64x128xf32>
    %69 = arith.addf %67, %68 : vector<64x128xf32>
    %c0_36 = arith.constant 0 : index
    %c0_37 = arith.constant 0 : index
    %70 = vector.load %arg3[%c0_36, %c0_37] : memref<64x128xf32, #tpu.memory_space<vmem>>, vector<64x128xf32>
    tpu.vector_store %arg3[%c0_36, %c0_37], %69 {strides = array<i32>} : memref<64x128xf32, #tpu.memory_space<vmem>>, vector<64x128xf32>,
    return
  }
}

</mosaic_0001>

<llo_original>
// kernel: rnn_net_forward.1
$region0: #{rnn_net_forward.1}
  #allocation0 [shape = 'u32[]', space=smem, size = 0x4, offset = 0x4, fixed_abs, tag = 'smem constant byte address 0x4 - core index']
  #allocation1 [shape = 'u32[72,128]{1,0:T(1,128)}', space=vmem, size = 0x9000, scoped, tag = 'internal scratch']
  #allocation2 [shape = 'f32[64,64]{1,0:T(8,128)}', space=vmem, size = 0x8000, scoped, tag = 'scratch operand']
  %s0 = inlined_call_operand.vmem [shape: f32[64,16], index: 0, kind: input, shape index: {}]
  %s1 = inlined_call_operand.vmem [shape: f32[8,64], index: 1, kind: input, shape index: {}]
  %s2 = inlined_call_operand.hbm [shape: f32[160,128], index: 2, kind: input, shape index: {}]
  %s3 = inlined_call_operand.vmem [shape: f32[64,128], index: 3, kind: output, shape index: {0}]
  %s4 = inlined_call_operand.vmem [shape: f32[2,8,32], index: 4, kind: output, shape index: {1}]
  %5 = xla_tuple %s3, %s4
  %s6 = sld [smem:[#allocation0]]
  $region34: #{rnn_net_forward.1} parent=0
    _
  %s8 = ssub.s32 1, %s6
  %s9 = scalar_select 0, %s8, %s6
  $region1: #{rnn_net_forward.1} parent=0
    #allocation3 [shape = 'u8[81920]{0}', space=vmem, size = 0x14000, scoped, tag = 'input window, operand 2, single buffered']
    #allocation4 [shape = 's32[1]{0}', space=sflag, size = 0x4, scoped, tag = 'scoped memory for rnn_net_forward.1']
    %10 = vsyncpa [#allocation4], 0
    // Predicated region
    $region2: #{rnn_net_forward.1} parent=1 // pred_check
      _
    $region3: #{rnn_net_forward.1} parent=1 // pred_check_branch
      %12 = sbr.rel (0) target = $region5
    $region4: #{rnn_net_forward.1} parent=1 // pred_region
      _
    $region5: #{rnn_net_forward.1} parent=1 // pred_fallthru
      _
    // Predicated region
    $region6: #{rnn_net_forward.1} parent=1 // pred_check
      _
    $region7: #{rnn_net_forward.1} parent=1 // pred_check_branch
      %14 = sbr.rel (0) target = $region9
    $region8: #{rnn_net_forward.1} parent=1 // pred_region
      _
    $region9: #{rnn_net_forward.1} parent=1 // pred_fallthru
      _
    // Predicated region
    $region10: #{rnn_net_forward.1} parent=1 // pred_check
      _
    $region11: #{rnn_net_forward.1} parent=1 // pred_check_branch
      %16 = sbr.rel (0) target = $region13
    $region12: #{rnn_net_forward.1} parent=1 // pred_region
      %18 = vsyncadd [#allocation4], 0
      %s19 = sshll.u32 %s2, 4
      %s20 = int_to_ptr.hbm [resolvable:$true] %s19
      %s21 = sshll.u32 [#allocation3], 4
      %s22 = int_to_ptr.vmem [resolvable:$true] %s21
      %27 = dma.hbm_to_vmem [thread:$0]  %s20, 2560, %s22, [#allocation4], 128, 128, 8
    $region13: #{rnn_net_forward.1} parent=1 // pred_fallthru
      _
    // Predicated region
    $region14: #{rnn_net_forward.1} parent=1 // pred_check
      _
    $region15: #{rnn_net_forward.1} parent=1 // pred_check_branch
      %29 = sbr.rel (0) target = $region17
    $region16: #{rnn_net_forward.1} parent=1 // pred_region
      %31 = dma.done [#allocation4], 2560
    $region17: #{rnn_net_forward.1} parent=1 // pred_fallthru
      _
    %v32 = vld [vmem:[#allocation3] sm:$0xff]
    %v33 = vld [vmem:[#allocation3 + $0x8] sm:$0xff]
    %v34 = vld [vmem:[#allocation3 + $0x10] sm:$0xff]
    %v35 = vld [vmem:[#allocation3 + $0x18] sm:$0xff]
    %v36 = vld [vmem:[#allocation3 + $0x20] sm:$0xff]
    %v37 = vld [vmem:[#allocation3 + $0x28] sm:$0xff]
    %v38 = vld [vmem:[#allocation3 + $0x30] sm:$0xff]
    %v39 = vld [vmem:[#allocation3 + $0x38] sm:$0xff]
    %v40 = vld [vmem:[#allocation3 + $0x40] sm:$0xff]
    %v41 = vld [vmem:[#allocation3 + $0x48] sm:$0xff]
    %v42 = vld [vmem:[#allocation3 + $0x50] sm:$0x1]
    %v43 = vld [vmem:[#allocation3 + $0x58] sm:$0xff]
    %v44 = vld [vmem:[#allocation3 + $0x60] sm:$0xff]
    %v45 = vld [vmem:[#allocation3 + $0x68] sm:$0xff]
    %v46 = vld [vmem:[#allocation3 + $0x70] sm:$0xff]
    %v47 = vld [vmem:[#allocation3 + $0x78] sm:$0xff]
    %v48 = vld [vmem:[#allocation3 + $0x80] sm:$0xff]
    %v49 = vld [vmem:[#allocation3 + $0x88] sm:$0xff]
    %v50 = vld [vmem:[#allocation3 + $0x90] sm:$0xff]
    %v51 = vld [vmem:[#allocation3 + $0x98] sm:$0x1]
    %v52 = vld [vmem:[%s0] sm:$0xff]
    %v53 = vld [vmem:[%s0 + $0x8] sm:$0xff]
    %v54 = vld [vmem:[%s0 + $0x10] sm:$0xff]
    %v55 = vld [vmem:[%s0 + $0x18] sm:$0xff]
    %v56 = vld [vmem:[%s0 + $0x20] sm:$0xff]
    %v57 = vld [vmem:[%s0 + $0x28] sm:$0xff]
    %v58 = vld [vmem:[%s0 + $0x30] sm:$0xff]
    %v59 = vld [vmem:[%s0 + $0x38] sm:$0xff]
    %v60 = vperm.slane %v42, 0
    %vm61 = vcmask 130048
    %v63 = vsel %vm61, %v52, 0
    %v66 = vsel %vm61, %v53, 0
    %v69 = vsel %vm61, %v54, 0
    %v72 = vsel %vm61, %v55, 0
    %v75 = vsel %vm61, %v56, 0
    %v78 = vsel %vm61, %v57, 0
    %v81 = vsel %vm61, %v58, 0
    %v84 = vsel %vm61, %v59, 0
    %86 = vmatpush.msra.mxu0 0.0
    %87 = vmatpush.msra.mxu0 0.0
    %88 = vmatpush.msra.mxu0 0.0
    %89 = vmatpush.msra.mxu0 0.0
    %90 = vmatpush.msra.mxu0 0.0
    %91 = vmatpush.msra.mxu0 0.0
    %92 = vmatpush.msra.mxu0 0.0
    %93 = vmatpush.msra.mxu0 0.0
    %94 = vmatpush.msra.mxu0 0.0
    %95 = vmatpush.msra.mxu0 0.0
    %96 = vmatpush.msra.mxu0 0.0
    %97 = vmatpush.msra.mxu0 0.0
    %98 = vmatpush.msra.mxu0 0.0
    %99 = vmatpush.msra.mxu0 0.0
    %100 = vmatpush.msra.mxu0 %v33
    %101 = vmatpush.msra.mxu0 %v32
    %102 = vmatmul.f32.gmra.mxu0 %v63
    %v103 = vpop.f32.mrf.mxu0
    %v104 = vadd.f32 %v60, %v103
    %105 = vmatmul.f32.gmra.mxu0 %v66
    %v106 = vpop.f32.mrf.mxu0
    %v107 = vadd.f32 %v60, %v106
    %108 = vmatmul.f32.gmra.mxu0 %v69
    %v109 = vpop.f32.mrf.mxu0
    %v110 = vadd.f32 %v60, %v109
    %111 = vmatmul.f32.gmra.mxu0 %v72
    %v112 = vpop.f32.mrf.mxu0
    %v113 = vadd.f32 %v60, %v112
    %114 = vmatmul.f32.gmra.mxu0 %v75
    %v115 = vpop.f32.mrf.mxu0
    %v116 = vadd.f32 %v60, %v115
    %117 = vmatmul.f32.gmra.mxu0 %v78
    %v118 = vpop.f32.mrf.mxu0
    %v119 = vadd.f32 %v60, %v118
    %120 = vmatmul.f32.gmra.mxu0 %v81
    %v121 = vpop.f32.mrf.mxu0
    %v122 = vadd.f32 %v60, %v121
    %123 = vmatmul.f32.gmra.mxu0 %v84
    %v124 = vpop.f32.mrf.mxu0
    %v125 = vadd.f32 %v60, %v124
    %126 = vdwg.mxu0
    %v127 = vld [vmem:[%s1] sm:$0xff]
    %v128 = vlaneseq
    %v129 = vand.u32 %v128, 127
    %vm130 = vcmask 523264
    %v132 = vsel %vm130, %v127, 0
    %134 = vmatpush.msra.mxu0 0.0
    %135 = vmatpush.msra.mxu0 0.0
    %136 = vmatpush.msra.mxu0 0.0
    %137 = vmatpush.msra.mxu0 0.0
    %138 = vmatpush.msra.mxu0 0.0
    %139 = vmatpush.msra.mxu0 0.0
    %140 = vmatpush.msra.mxu0 0.0
    %141 = vmatpush.msra.mxu0 0.0
    %142 = vmatpush.msra.mxu0 %v41
    %143 = vmatpush.msra.mxu0 %v40
    %144 = vmatpush.msra.mxu0 %v39
    %145 = vmatpush.msra.mxu0 %v38
    %146 = vmatpush.msra.mxu0 %v37
    %147 = vmatpush.msra.mxu0 %v36
    %148 = vmatpush.msra.mxu0 %v35
    %149 = vmatpush.msra.mxu0 %v34
    %150 = vmatmul.f32.gmra.mxu0 %v132
    %v151 = vpop.f32.mrf.mxu0
    %v152 = vadd.f32 0.0, %v151
    %153 = vdwg.mxu0
    %v154 = vadd.f32 %v104, %v152
    %v155 = vtanh.pop %v154
    %vm156 = vcmp.lt.s32.totalorder %v129, 32
    %v157 = vsel %vm156, %v155, %v127
    %v159 = vsel %vm130, %v157, 0
    %161 = vmatpush.msra.mxu0 0.0
    %162 = vmatpush.msra.mxu0 0.0
    %163 = vmatpush.msra.mxu0 0.0
    %164 = vmatpush.msra.mxu0 0.0
    %165 = vmatpush.msra.mxu0 0.0
    %166 = vmatpush.msra.mxu0 0.0
    %167 = vmatpush.msra.mxu0 0.0
    %168 = vmatpush.msra.mxu0 0.0
    %169 = vmatpush.msra.mxu0 %v41
    %170 = vmatpush.msra.mxu0 %v40
    %171 = vmatpush.msra.mxu0 %v39
    %172 = vmatpush.msra.mxu0 %v38
    %173 = vmatpush.msra.mxu0 %v37
    %174 = vmatpush.msra.mxu0 %v36
    %175 = vmatpush.msra.mxu0 %v35
    %176 = vmatpush.msra.mxu0 %v34
    %177 = vmatmul.f32.gmra.mxu0 %v159
    %v178 = vpop.f32.mrf.mxu0
    %v179 = vadd.f32 0.0, %v178
    %180 = vdwg.mxu0
    %v181 = vadd.f32 %v107, %v179
    %v182 = vtanh.pop %v181
    %183 = vst.msk [vmem:[#allocation2] sm:$0xff] %vm130, %v182
    %v185 = vsel %vm130, %v182, 0
    %187 = vmatpush.msra.mxu0 0.0
    %188 = vmatpush.msra.mxu0 0.0
    %189 = vmatpush.msra.mxu0 0.0
    %190 = vmatpush.msra.mxu0 0.0
    %191 = vmatpush.msra.mxu0 0.0
    %192 = vmatpush.msra.mxu0 0.0
    %193 = vmatpush.msra.mxu0 0.0
    %194 = vmatpush.msra.mxu0 0.0
    %195 = vmatpush.msra.mxu0 %v41
    %196 = vmatpush.msra.mxu0 %v40
    %197 = vmatpush.msra.mxu0 %v39
    %198 = vmatpush.msra.mxu0 %v38
    %199 = vmatpush.msra.mxu0 %v37
    %200 = vmatpush.msra.mxu0 %v36
    %201 = vmatpush.msra.mxu0 %v35
    %202 = vmatpush.msra.mxu0 %v34
    %203 = vmatmul.f32.gmra.mxu0 %v185
    %v204 = vpop.f32.mrf.mxu0
    %v205 = vadd.f32 0.0, %v204
    %206 = vdwg.mxu0
    %v207 = vadd.f32 %v110, %v205
    %v208 = vtanh.pop %v207
    %209 = vst.msk [vmem:[#allocation2 + $0x8] sm:$0xff] %vm130, %v208
    %v211 = vsel %vm130, %v208, 0
    %213 = vmatpush.msra.mxu0 0.0
    %214 = vmatpush.msra.mxu0 0.0
    %215 = vmatpush.msra.mxu0 0.0
    %216 = vmatpush.msra.mxu0 0.0
    %217 = vmatpush.msra.mxu0 0.0
    %218 = vmatpush.msra.mxu0 0.0
    %219 = vmatpush.msra.mxu0 0.0
    %220 = vmatpush.msra.mxu0 0.0
    %221 = vmatpush.msra.mxu0 %v41
    %222 = vmatpush.msra.mxu0 %v40
    %223 = vmatpush.msra.mxu0 %v39
    %224 = vmatpush.msra.mxu0 %v38
    %225 = vmatpush.msra.mxu0 %v37
    %226 = vmatpush.msra.mxu0 %v36
    %227 = vmatpush.msra.mxu0 %v35
    %228 = vmatpush.msra.mxu0 %v34
    %229 = vmatmul.f32.gmra.mxu0 %v211
    %v230 = vpop.f32.mrf.mxu0
    %v231 = vadd.f32 0.0, %v230
    %232 = vdwg.mxu0
    %v233 = vadd.f32 %v113, %v231
    %v234 = vtanh.pop %v233
    %235 = vst.msk [vmem:[#allocation2 + $0x10] sm:$0xff] %vm130, %v234
    %v237 = vsel %vm130, %v234, 0
    %239 = vmatpush.msra.mxu0 0.0
    %240 = vmatpush.msra.mxu0 0.0
    %241 = vmatpush.msra.mxu0 0.0
    %242 = vmatpush.msra.mxu0 0.0
    %243 = vmatpush.msra.mxu0 0.0
    %244 = vmatpush.msra.mxu0 0.0
    %245 = vmatpush.msra.mxu0 0.0
    %246 = vmatpush.msra.mxu0 0.0
    %247 = vmatpush.msra.mxu0 %v41
    %248 = vmatpush.msra.mxu0 %v40
    %249 = vmatpush.msra.mxu0 %v39
    %250 = vmatpush.msra.mxu0 %v38
    %251 = vmatpush.msra.mxu0 %v37
    %252 = vmatpush.msra.mxu0 %v36
    %253 = vmatpush.msra.mxu0 %v35
    %254 = vmatpush.msra.mxu0 %v34
    %255 = vmatmul.f32.gmra.mxu0 %v237
    %v256 = vpop.f32.mrf.mxu0
    %v257 = vadd.f32 0.0, %v256
    %258 = vdwg.mxu0
    %v259 = vadd.f32 %v116, %v257
    %v260 = vtanh.pop %v259
    %261 = vst.msk [vmem:[#allocation2 + $0x18] sm:$0xff] %vm130, %v260
    %v263 = vsel %vm130, %v260, 0
    %265 = vmatpush.msra.mxu0 0.0
    %266 = vmatpush.msra.mxu0 0.0
    %267 = vmatpush.msra.mxu0 0.0
    %268 = vmatpush.msra.mxu0 0.0
    %269 = vmatpush.msra.mxu0 0.0
    %270 = vmatpush.msra.mxu0 0.0
    %271 = vmatpush.msra.mxu0 0.0
    %272 = vmatpush.msra.mxu0 0.0
    %273 = vmatpush.msra.mxu0 %v41
    %274 = vmatpush.msra.mxu0 %v40
    %275 = vmatpush.msra.mxu0 %v39
    %276 = vmatpush.msra.mxu0 %v38
    %277 = vmatpush.msra.mxu0 %v37
    %278 = vmatpush.msra.mxu0 %v36
    %279 = vmatpush.msra.mxu0 %v35
    %280 = vmatpush.msra.mxu0 %v34
    %281 = vmatmul.f32.gmra.mxu0 %v263
    %v282 = vpop.f32.mrf.mxu0
    %v283 = vadd.f32 0.0, %v282
    %284 = vdwg.mxu0
    %v285 = vadd.f32 %v119, %v283
    %v286 = vtanh.pop %v285
    %287 = vst.msk [vmem:[#allocation2 + $0x20] sm:$0xff] %vm130, %v286
    %v289 = vsel %vm130, %v286, 0
    %291 = vmatpush.msra.mxu0 0.0
    %292 = vmatpush.msra.mxu0 0.0
    %293 = vmatpush.msra.mxu0 0.0
    %294 = vmatpush.msra.mxu0 0.0
    %295 = vmatpush.msra.mxu0 0.0
    %296 = vmatpush.msra.mxu0 0.0
    %297 = vmatpush.msra.mxu0 0.0
    %298 = vmatpush.msra.mxu0 0.0
    %299 = vmatpush.msra.mxu0 %v41
    %300 = vmatpush.msra.mxu0 %v40
    %301 = vmatpush.msra.mxu0 %v39
    %302 = vmatpush.msra.mxu0 %v38
    %303 = vmatpush.msra.mxu0 %v37
    %304 = vmatpush.msra.mxu0 %v36
    %305 = vmatpush.msra.mxu0 %v35
    %306 = vmatpush.msra.mxu0 %v34
    %307 = vmatmul.f32.gmra.mxu0 %v289
    %v308 = vpop.f32.mrf.mxu0
    %v309 = vadd.f32 0.0, %v308
    %310 = vdwg.mxu0
    %v311 = vadd.f32 %v122, %v309
    %v312 = vtanh.pop %v311
    %313 = vst.msk [vmem:[#allocation2 + $0x28] sm:$0xff] %vm130, %v312
    %v315 = vsel %vm130, %v312, 0
    %317 = vmatpush.msra.mxu0 0.0
    %318 = vmatpush.msra.mxu0 0.0
    %319 = vmatpush.msra.mxu0 0.0
    %320 = vmatpush.msra.mxu0 0.0
    %321 = vmatpush.msra.mxu0 0.0
    %322 = vmatpush.msra.mxu0 0.0
    %323 = vmatpush.msra.mxu0 0.0
    %324 = vmatpush.msra.mxu0 0.0
    %325 = vmatpush.msra.mxu0 %v41
    %326 = vmatpush.msra.mxu0 %v40
    %327 = vmatpush.msra.mxu0 %v39
    %328 = vmatpush.msra.mxu0 %v38
    %329 = vmatpush.msra.mxu0 %v37
    %330 = vmatpush.msra.mxu0 %v36
    %331 = vmatpush.msra.mxu0 %v35
    %332 = vmatpush.msra.mxu0 %v34
    %333 = vmatmul.f32.gmra.mxu0 %v315
    %v334 = vpop.f32.mrf.mxu0
    %v335 = vadd.f32 0.0, %v334
    %336 = vdwg.mxu0
    %v337 = vadd.f32 %v125, %v335
    %v338 = vtanh.pop %v337
    %339 = vst.msk [vmem:[#allocation2 + $0x30] sm:$0xff] %vm130, %v338
    %vm340 = vcmask 261120
    %341 = vst.msk [vmem:[%s4] sm:$0xff] %vm340, %v338
    %v343 = vsel %vm130, %v338, 0
    %345 = vmatpush.msra.mxu0 0.0
    %346 = vmatpush.msra.mxu0 0.0
    %347 = vmatpush.msra.mxu0 0.0
    %348 = vmatpush.msra.mxu0 0.0
    %349 = vmatpush.msra.mxu0 0.0
    %350 = vmatpush.msra.mxu0 0.0
    %351 = vmatpush.msra.mxu0 0.0
    %352 = vmatpush.msra.mxu0 0.0
    %353 = vmatpush.msra.mxu0 %v41
    %354 = vmatpush.msra.mxu0 %v40
    %355 = vmatpush.msra.mxu0 %v39
    %356 = vmatpush.msra.mxu0 %v38
    %357 = vmatpush.msra.mxu0 %v37
    %358 = vmatpush.msra.mxu0 %v36
    %359 = vmatpush.msra.mxu0 %v35
    %360 = vmatpush.msra.mxu0 %v34
    %361 = vmatmul.f32.gmra.mxu0 %v343
    %v362 = vpop.f32.mrf.mxu0
    %v363 = vadd.f32 0.0, %v362
    %364 = vdwg.mxu0
    %v365 = vadd.f32 %v125, %v363
    %v366 = vtanh.pop %v365
    %367 = vst.msk [vmem:[#allocation2 + $0x38] sm:$0xff] %vm130, %v366
    %369 = vrot.lane.b32.xlu0 %v366, 96
    %v370 = vpop.permute.xlu0 %369
    %s372 = scalar_lea.vmem %s4, 8
    %373 = vst.msk [vmem:[%s372] sm:$0xff] %vm340, %v370
    %v374 = vld [vmem:[#allocation2] sm:$0xff]
    %v375 = vld [vmem:[#allocation2 + $0x8] sm:$0xff]
    %v376 = vld [vmem:[#allocation2 + $0x10] sm:$0xff]
    %v377 = vld [vmem:[#allocation2 + $0x18] sm:$0xff]
    %v378 = vld [vmem:[#allocation2 + $0x20] sm:$0xff]
    %v379 = vld [vmem:[#allocation2 + $0x28] sm:$0xff]
    %v380 = vld [vmem:[#allocation2 + $0x30] sm:$0xff]
    %v381 = vld [vmem:[#allocation2 + $0x38] sm:$0xff]
    %v382 = vperm.slane %v51, 0
    %v384 = vsel %vm130, %v374, 0
    %v387 = vsel %vm130, %v375, 0
    %v390 = vsel %vm130, %v376, 0
    %v393 = vsel %vm130, %v377, 0
    %v396 = vsel %vm130, %v378, 0
    %v399 = vsel %vm130, %v379, 0
    %v402 = vsel %vm130, %v380, 0
    %v405 = vsel %vm130, %v381, 0
    %407 = vmatpush.msra.mxu0 0.0
    %408 = vmatpush.msra.mxu0 0.0
    %409 = vmatpush.msra.mxu0 0.0
    %410 = vmatpush.msra.mxu0 0.0
    %411 = vmatpush.msra.mxu0 0.0
    %412 = vmatpush.msra.mxu0 0.0
    %413 = vmatpush.msra.mxu0 0.0
    %414 = vmatpush.msra.mxu0 0.0
    %415 = vmatpush.msra.mxu0 %v50
    %416 = vmatpush.msra.mxu0 %v49
    %417 = vmatpush.msra.mxu0 %v48
    %418 = vmatpush.msra.mxu0 %v47
    %419 = vmatpush.msra.mxu0 %v46
    %420 = vmatpush.msra.mxu0 %v45
    %421 = vmatpush.msra.mxu0 %v44
    %422 = vmatpush.msra.mxu0 %v43
    %423 = vmatmul.f32.gmra.mxu0 %v384
    %v424 = vpop.f32.mrf.mxu0
    %v425 = vadd.f32 %v382, %v424
    %426 = vmatmul.f32.gmra.mxu0 %v387
    %v427 = vpop.f32.mrf.mxu0
    %v428 = vadd.f32 %v382, %v427
    %429 = vmatmul.f32.gmra.mxu0 %v390
    %v430 = vpop.f32.mrf.mxu0
    %v431 = vadd.f32 %v382, %v430
    %432 = vmatmul.f32.gmra.mxu0 %v393
    %v433 = vpop.f32.mrf.mxu0
    %v434 = vadd.f32 %v382, %v433
    %435 = vmatmul.f32.gmra.mxu0 %v396
    %v436 = vpop.f32.mrf.mxu0
    %v437 = vadd.f32 %v382, %v436
    %438 = vmatmul.f32.gmra.mxu0 %v399
    %v439 = vpop.f32.mrf.mxu0
    %v440 = vadd.f32 %v382, %v439
    %441 = vmatmul.f32.gmra.mxu0 %v402
    %v442 = vpop.f32.mrf.mxu0
    %v443 = vadd.f32 %v382, %v442
    %444 = vmatmul.f32.gmra.mxu0 %v405
    %v445 = vpop.f32.mrf.mxu0
    %v446 = vadd.f32 %v382, %v445
    %447 = vdwg.mxu0
    %448 = vst [vmem:[%s3] sm:$0xff] %v425
    %449 = vst [vmem:[%s3 + $0x8] sm:$0xff] %v428
    %450 = vst [vmem:[%s3 + $0x10] sm:$0xff] %v431
    %451 = vst [vmem:[%s3 + $0x18] sm:$0xff] %v434
    %452 = vst [vmem:[%s3 + $0x20] sm:$0xff] %v437
    %453 = vst [vmem:[%s3 + $0x28] sm:$0xff] %v440
    %454 = vst [vmem:[%s3 + $0x30] sm:$0xff] %v443
    %455 = vst [vmem:[%s3 + $0x38] sm:$0xff] %v446
    // Predicated region
    $region18: #{rnn_net_forward.1} parent=1 // pred_check
      _
    $region19: #{rnn_net_forward.1} parent=1 // pred_check_branch
      %457 = sbr.rel (0) target = $region21
    $region20: #{rnn_net_forward.1} parent=1 // pred_region
      _
    $region21: #{rnn_net_forward.1} parent=1 // pred_fallthru
      _
    // Predicated region
    $region22: #{rnn_net_forward.1} parent=1 // pred_check
      _
    $region23: #{rnn_net_forward.1} parent=1 // pred_check_branch
      %459 = sbr.rel (0) target = $region25
    $region24: #{rnn_net_forward.1} parent=1 // pred_region
      _
    $region25: #{rnn_net_forward.1} parent=1 // pred_fallthru
      _
    // Predicated region
    $region26: #{rnn_net_forward.1} parent=1 // pred_check
      _
    $region27: #{rnn_net_forward.1} parent=1 // pred_check_branch
      %461 = sbr.rel (0) target = $region29
    $region28: #{rnn_net_forward.1} parent=1 // pred_region
      _
    $region29: #{rnn_net_forward.1} parent=1 // pred_fallthru
      _
    // Predicated region
    $region30: #{rnn_net_forward.1} parent=1 // pred_check
      _
    $region31: #{rnn_net_forward.1} parent=1 // pred_check_branch
      %463 = sbr.rel (0) target = $region33
    $region32: #{rnn_net_forward.1} parent=1 // pred_region
      _
    $region33: #{rnn_net_forward.1} parent=1 // pred_fallthru
      _
    %464 = vsyncpa [#allocation4], 1

</llo_original>
